<compile_context>
chip_gen: v6e
topology: v6e:2x2x1
jax: 0.10.0
libtpu: 0.0.40
codegen_flags: <defaults>
</compile_context>

<pallas_src>
import functools

import jax
import jax.numpy as jnp
from jax.experimental import pallas as pl
from jax.experimental.pallas import tpu as pltpu


def _rope_freqs_kernel(offset_ref, lane_ref, out_ref, *, rows_per_out_row: int):
    """Write one (tS, W) tile of the (lane-folded) RoPE frequency table.

    offset_ref : SMEM (1,)  int32 -- runtime position offset (no recompiles).
    lane_ref   : VMEM (2, W) f32  -- row 0: inv_freq duplicated/tiled over lanes
                                     row 1: per-lane position offset (lane // emb_dim)
    out_ref    : VMEM (tS, W) f32 -- out[r, c] =
                    (offset + (tile_base + r)*k + lane_off[c]) * inv_freq[c]
    """
    tS, W = out_ref.shape
    i = pl.program_id(0)
    # First sequence position covered by this tile (exact integer arithmetic).
    base = offset_ref[0] + i * (tS * rows_per_out_row)

    row = jax.lax.broadcasted_iota(jnp.int32, (tS, W), 0)       # row index in tile
    pos_int = base + row * rows_per_out_row                     # exact int32 positions

    inv_freq = lane_ref[0:1, :]                                 # [1, W] broadcast
    lane_off = lane_ref[1:2, :]                                 # [1, W] broadcast

    pos = pos_int.astype(jnp.float32) + lane_off
    out_ref[...] = pos * inv_freq


@functools.lru_cache(maxsize=None)
def _build_forward(S: int, rows_alloc: int, tS: int, num_tiles: int,
                   W: int, k: int, De: int):
    """Build (and cache) a jitted forward for one static shape configuration."""
    kernel = functools.partial(_rope_freqs_kernel, rows_per_out_row=k)

    call = pl.pallas_call(
        kernel,
        out_shape=jax.ShapeDtypeStruct((rows_alloc, W), jnp.float32),
        grid_spec=pltpu.PrefetchScalarGridSpec(
            num_scalar_prefetch=1,                # offset -> SMEM, runtime scalar
            grid=(num_tiles,),
            in_specs=[pl.BlockSpec((2, W), lambda i, off: (0, 0))],
            out_specs=pl.BlockSpec((tS, W), lambda i, off: (i, 0)),
        ),
        compiler_params=pltpu.CompilerParams(
            dimension_semantics=("parallel",),    # shard seq tiles across TCs
        ),
    )

    def fwd(offset_arr, lane_tab):
        out2d = call(offset_arr, lane_tab)
        # Unfold (pure row-major reshape), drop padding, add singleton axes.
        emb = out2d.reshape(rows_alloc * k, De)[:S]
        return emb[:, None, None, :]              # [S, 1, 1, emb_dim]

    return jax.jit(fwd)


class RotaryEmbeddingMegatronPallas:
    """JAX/Pallas counterpart of the PyTorch module (forward path only)."""

    def __init__(self, kv_channels: int, rotary_base: int = 10000):
        dim = kv_channels
        self.dim = dim
        # Identical formula to the torch module.
        self.inv_freq = 1.0 / (
            rotary_base ** (jnp.arange(0, dim, 2, dtype=jnp.float32) / dim)
        )  # [ceil(dim/2)]
        half = int(self.inv_freq.shape[0])
        self.emb_dim = 2 * half  # == dim for even kv_channels

        # Lane-density folding: put k consecutive positions side by side in one
        # output row so the store width is >= 128 lanes (unmasked vst).
        De = self.emb_dim
        if De < 128 and 128 % De == 0:
            k = 128 // De
        else:
            k = 1
        self.fold = k
        self.lane_width = k * De

        inv_dup = jnp.concatenate([self.inv_freq, self.inv_freq])        # [De]
        inv_tiled = jnp.tile(inv_dup, (k,))                              # [W]
        lane_off = jnp.repeat(jnp.arange(k, dtype=jnp.float32), De)      # [W]
        self.lane_tab = jnp.stack([inv_tiled, lane_off], axis=0)         # [2, W]

    def forward(self, max_seq_len: int, offset=0) -> jax.Array:
        S = int(max_seq_len)
        De, k, W = self.emb_dim, self.fold, self.lane_width

        # --- tiling over the (folded) sequence axis -------------------------
        rows = -(-S // k)                       # folded rows needed
        bytes_per_row = W * 4
        # ~1 MiB f32 output block: fits v5e's 16 MiB scoped VMEM with
        # double-buffering and sits at the HBM-write roofline plateau.
        t_rows = max(8, ((1 << 20) // bytes_per_row) // 8 * 8)
        if rows <= t_rows:
            tS = rows                           # single block (== full sublane dim)
            rows_alloc = rows
        else:
            tS = t_rows                         # multiple of 8
            rows_alloc = -(-rows // tS) * tS    # pad so blocks divide evenly
        num_tiles = rows_alloc // tS

        fwd = _build_forward(S, rows_alloc, tS, num_tiles, W, k, De)
        offset_arr = jnp.asarray(offset, dtype=jnp.int32).reshape(1)
        return fwd(offset_arr, self.lane_tab)   # [S, 1, 1, dim]

    __call__ = forward


def _reference_forward(inv_freq: jax.Array, max_seq_len: int, offset: int = 0):
    seq = jnp.arange(max_seq_len, dtype=jnp.float32) + offset
    freqs = jnp.outer(seq, inv_freq)
    emb = jnp.concatenate([freqs, freqs], axis=-1)
    return emb[:, None, None, :]


if __name__ == "__main__":
    # Module has no random parameters (inv_freq is analytic); key kept for convention.
    _ = jax.random.PRNGKey(0)

    # --- small config (exercises the lane-dense folded path: D=32 -> k=4) ---
    kv_channels = 32
    max_seq_len = 8
    offset = 0
    rope = RotaryEmbeddingMegatronPallas(kv_channels=kv_channels, rotary_base=10000)
    emb = jax.block_until_ready(rope(max_seq_len, offset))
    ref = _reference_forward(rope.inv_freq, max_seq_len, offset)
    assert emb.shape == (max_seq_len, 1, 1, kv_channels), emb.shape
    assert emb.dtype == jnp.float32
    assert jnp.allclose(emb, ref, atol=1e-6, rtol=1e-6), "mismatch vs reference (small)"

    # Runtime offset change on the same shapes (reuses the cached jitted call).
    emb2 = jax.block_until_ready(rope(max_seq_len, 5))
    ref2 = _reference_forward(rope.inv_freq, max_seq_len, 5)
    assert jnp.allclose(emb2, ref2, atol=1e-6, rtol=1e-6), "mismatch vs reference (offset)"

    # --- larger config (exercises the multi-tile grid path: D=128, 2 tiles) ---
    rope_big = RotaryEmbeddingMegatronPallas(kv_channels=128, rotary_base=10000)
    emb_big = jax.block_until_ready(rope_big(4096, 7))
    ref_big = _reference_forward(rope_big.inv_freq, 4096, 7)
    assert emb_big.shape == (4096, 1, 1, 128), emb_big.shape
    assert jnp.allclose(emb_big, ref_big, atol=1e-6, rtol=1e-6), "mismatch vs reference (big)"

    print("KERNEL_OK")
</pallas_src>

<mosaic_0001>
module attributes {stable_mosaic.version = 11 : i64} {
  func.func @_rope_freqs_kernel(%arg0: i32, %arg1: memref<1xi32, #tpu.memory_space<smem>>, %arg2: memref<2x128xf32, #tpu.memory_space<vmem>>, %arg3: memref<2x128xf32, #tpu.memory_space<vmem>>) attributes {dimension_semantics = [#tpu.dimension_semantics<parallel>], iteration_bounds = array<i64: 1>, scalar_prefetch = 1 : i64, scratch_operands = 0 : i64, tpu.core_type = #tpu.core_type<tc>, window_params = [{pipeline_mode = #tpu.pipeline_mode<synchronous>, transform_indices = @transform_0, window_bounds = array<i64: 2, 128>}, {transform_indices = @transform_1, window_bounds = array<i64: 2, 128>}]} {
    %c0 = arith.constant 0 : index
    %0 = memref.load %arg1[%c0] : memref<1xi32, #tpu.memory_space<smem>>
    %c8_i32 = arith.constant 8 : i32
    %1 = arith.muli %arg0, %c8_i32 : i32
    %2 = arith.addi %0, %1 : i32
    %3 = tpu.iota {dimensions = array<i32: 0>} : vector<2x128xi32>
    %c4_i32 = arith.constant 4 : i32
    %4 = vector.broadcast %c4_i32 : i32 to vector<2x128xi32>
    %5 = arith.muli %3, %4 : vector<2x128xi32>
    %6 = vector.broadcast %2 : i32 to vector<2x128xi32>
    %7 = arith.addi %6, %5 : vector<2x128xi32>
    %c0_0 = arith.constant 0 : index
    %c0_1 = arith.constant 0 : index
    %8 = vector.load %arg2[%c0_0, %c0_1] : memref<2x128xf32, #tpu.memory_space<vmem>>, vector<1x128xf32>
    %c1 = arith.constant 1 : index
    %c0_2 = arith.constant 0 : index
    %9 = vector.load %arg2[%c1, %c0_2] : memref<2x128xf32, #tpu.memory_space<vmem>>, vector<1x128xf32>
    %10 = arith.sitofp %7 : vector<2x128xi32> to vector<2x128xf32>
    %11 = vector.broadcast %9 : vector<1x128xf32> to vector<2x128xf32>
    %12 = arith.addf %10, %11 : vector<2x128xf32>
    %13 = vector.broadcast %8 : vector<1x128xf32> to vector<2x128xf32>
    %14 = arith.mulf %12, %13 : vector<2x128xf32>
    %c0_3 = arith.constant 0 : index
    %c0_4 = arith.constant 0 : index
    %15 = vector.load %arg3[%c0_3, %c0_4] : memref<2x128xf32, #tpu.memory_space<vmem>>, vector<2x128xf32>
    tpu.vector_store %arg3[%c0_3, %c0_4], %14 {strides = array<i32>} : memref<2x128xf32, #tpu.memory_space<vmem>>, vector<2x128xf32>,
    return
  }
  func.func @transform_0(%arg0: i32, %arg1: memref<1xi32, #tpu.memory_space<smem>>) -> (i32, i32) {
    %c0_i32 = arith.constant 0 : i32
    %c0_i32_0 = arith.constant 0 : i32
    %c0_i32_1 = arith.constant 0 : i32
    return %c0_i32, %c0_i32_0 : i32, i32
  }
  func.func @transform_1(%arg0: i32, %arg1: memref<1xi32, #tpu.memory_space<smem>>) -> (i32, i32) {
    %c0_i32 = arith.constant 0 : i32
    %c0_i32_0 = arith.constant 0 : i32
    return %arg0, %c0_i32 : i32, i32
  }
}

</mosaic_0001>

<llo_original>
// kernel: fwd.1
$region0: #{fwd.1}
  #allocation0 [shape = 'u32[]', space=smem, size = 0x4, offset = 0x4, fixed_abs, tag = 'smem constant byte address 0x4 - core index']
  #allocation1 [shape = 'u32[144,128]{1,0:T(1,128)}', space=vmem, size = 0x12000, scoped, tag = 'internal scratch']
  #allocation2 [shape = 's32[1]{0}', space=sflag, size = 0x4, scoped, tag = 'scoped memory for fwd.1']
  #allocation3 [shape = 's32[1]{0:T(128)S(6)}', space=smem, size = 0x200, scoped, tag = 'prefetched SMEM operand 0']
  %s0 = inlined_call_operand.<no memory space> [shape: s32[1], index: 0, kind: input, shape index: {}]
  %s1 = inlined_call_operand.vmem [shape: f32[2,128], index: 1, kind: input, shape index: {}]
  %s2 = inlined_call_operand.vmem [shape: f32[2,128], index: 2, kind: output, shape index: {}]
  %s3 = sld [smem:[#allocation0]]
  $region14: #{fwd.1} parent=0
    _
  %s5 = ssub.s32 1, %s3
  %s6 = scalar_select 0, %s5, %s3
  %7 = sst [smem:[#allocation3]] %s0
  // Predicated region
  $region2: #{fwd.1} parent=0 // pred_check
    _
  $region3: #{fwd.1} parent=0 // pred_check_branch
    %9 = sbr.rel (0) target = $region5
  $region4: #{fwd.1} parent=0 // pred_region
    _
  $region5: #{fwd.1} parent=0 // pred_fallthru
    _
  %s10 = sld [smem:[#allocation3]]
  %s11 = smul.u32 0, 8
  %s12 = sadd.s32 %s10, %s11
  %v13 = vlaneseq
  %v14 = vshrl.u32 %v13, 7
  %v15 = vmul.u32 %v14, 4
  %v16 = vstv %s12
  %v17 = vadd.s32 %v16, %v15
  %v18 = vld [vmem:[%s1] sm:$0x1]
  %v19 = vld [vmem:[%s1 + $0x1] sm:$0x1]
  %v20 = vcvt.s32.f32 %v17
  %v21 = vlaneseq
  %v22 = vshrl.u32 %v21, 7
  %v23 = vsub.s32 0, %v22
  %v24 = vrot.slane %v19, %v23
  %v25 = vadd.f32 %v20, %v24
  %v26 = vlaneseq
  %v27 = vshrl.u32 %v26, 7
  %v28 = vsub.s32 0, %v27
  %v29 = vrot.slane %v18, %v28
  %v30 = vmul.f32 %v25, %v29
  %31 = vst [vmem:[%s2] sm:$0x3] %v30
  // Predicated region
  $region6: #{fwd.1} parent=0 // pred_check
    _
  $region7: #{fwd.1} parent=0 // pred_check_branch
    %33 = sbr.rel (0) target = $region9
  $region8: #{fwd.1} parent=0 // pred_region
    _
  $region9: #{fwd.1} parent=0 // pred_fallthru
    _
  // Predicated region
  $region10: #{fwd.1} parent=0 // pred_check
    _
  $region11: #{fwd.1} parent=0 // pred_check_branch
    %35 = sbr.rel (0) target = $region13
  $region12: #{fwd.1} parent=0 // pred_region
    _
  $region13: #{fwd.1} parent=0 // pred_fallthru
    _

</llo_original>
